<compile_context>
chip_gen: v7x
topology: tpu7x:2x2x1
jax: 0.10.0
libtpu: 0.0.40
codegen_flags: <defaults>
</compile_context>

<pallas_src>
import random

import numpy as np
import jax
import jax.numpy as jnp
from jax.experimental import pallas as pl
from jax.experimental.pallas import tpu as pltpu

_LANE = 128            # lane width; feature dims padded to a multiple of this
_ROW_PAD = 16          # sublane padding (covers bf16 packed layout)
_MAX_ROW_TILE = 256    # target-node rows per grid step


def _round_up(x, m):
    return ((x + m - 1) // m) * m


def _choose_row_tile(n, max_tile=_MAX_ROW_TILE):
    n_pad = _round_up(max(int(n), 1), _ROW_PAD)
    if n_pad <= max_tile:
        return n_pad, n_pad
    return max_tile, _round_up(int(n), max_tile)


# ----------------------------- fused Pallas kernel --------------------------

def _fused_sage_kernel(mask_ref, invd_ref, src_ref, self_ref, wnei_ref, wself_ref,
                       out_ref):
    """mean-aggregate + SAGE update + relu for one tile of target-node rows."""
    # un-normalized neighbor sum on the MXU (bf16 in, f32 accumulate)
    agg = jnp.dot(mask_ref[...], src_ref[...], preferred_element_type=jnp.float32)
    # scale by precomputed 1/num_sampled_neighbors (host f32 column, broadcast mult)
    neigh = (agg * invd_ref[...]).astype(jnp.bfloat16)
    # SAGE update: relu(neigh @ Wn + self @ Ws); weights pre-transposed to (d_in, d_out)
    z = jnp.dot(neigh, wnei_ref[...], preferred_element_type=jnp.float32)
    z = z + jnp.dot(self_ref[...], wself_ref[...], preferred_element_type=jnp.float32)
    out_ref[...] = jnp.maximum(z, 0.0).astype(out_ref.dtype)


def fused_sage_layer(mask, src_feats, self_feats, wnei_t, wself_t):
    """
    mask       : (n_tgt, n_src_real) host numpy 0/1 neighbor membership
    src_feats  : (n_src_rows, d_in_pad)  bf16 source-node embeddings (device,
                 already lane-padded; n_src_rows >= n_src_real is allowed,
                 extra rows have zero mask weight)
    self_feats : (n_tgt, d0_pad)       bf16 raw input features of targets (device)
    wnei_t     : (d_in_pad, d_out_pad) bf16 pre-transposed + lane-padded W_nei
    wself_t    : (d0_pad,  d_out_pad)  bf16 pre-transposed + lane-padded W_self
    returns    : (n_tgt_pad, d_out_pad) bf16 (row/lane padded; slice at the very end)
    """
    n_tgt, n_src_real = mask.shape
    n_src_rows = src_feats.shape[0]
    d_in_pad, d_out_pad = wnei_t.shape
    d0_pad = wself_t.shape[0]

    tm, n_tgt_pad = _choose_row_tile(n_tgt)
    n_src_pad = _round_up(max(n_src_real, n_src_rows), _LANE)

    # per-row inverse neighbor count, computed on host in f32 (no in-kernel reduce)
    deg = np.maximum(np.asarray(mask, np.float32).sum(axis=1, keepdims=True), 1.0)
    inv_deg = np.zeros((n_tgt_pad, 1), np.float32)
    inv_deg[:n_tgt] = 1.0 / deg
    inv_deg = jnp.asarray(inv_deg)

    mask_np = np.zeros((n_tgt_pad, n_src_pad), np.float32)
    mask_np[:n_tgt, :n_src_real] = mask
    mask_p = jnp.asarray(mask_np, dtype=jnp.bfloat16)

    src_p = jnp.pad(src_feats.astype(jnp.bfloat16),
                    ((0, n_src_pad - n_src_rows),
                     (0, d_in_pad - src_feats.shape[1])))
    self_p = jnp.pad(self_feats.astype(jnp.bfloat16),
                     ((0, n_tgt_pad - self_feats.shape[0]),
                      (0, d0_pad - self_feats.shape[1])))

    grid = (n_tgt_pad // tm,)

    # VMEM budget (bf16 bytes, x2 for Pallas double buffering); capped at 60 MiB so
    # the same kernel stays inside v7x's 64 MiB physical VMEM (v5e/v6e have 128 MiB).
    per_step = 2 * (tm * n_src_pad + n_src_pad * d_in_pad + tm * d0_pad
                    + d_in_pad * d_out_pad + d0_pad * d_out_pad + tm * d_out_pad
                    + 2 * tm)
    vmem_limit = int(min(max(2 * per_step, 32 * 2 ** 20), 60 * 2 ** 20))

    out = pl.pallas_call(
        _fused_sage_kernel,
        out_shape=jax.ShapeDtypeStruct((n_tgt_pad, d_out_pad), jnp.bfloat16),
        grid=grid,
        in_specs=[
            pl.BlockSpec((tm, n_src_pad), lambda i: (i, 0)),        # mask tile
            pl.BlockSpec((tm, 1), lambda i: (i, 0)),                # 1/deg column
            pl.BlockSpec((n_src_pad, d_in_pad), lambda i: (0, 0)),  # src feats (shared)
            pl.BlockSpec((tm, d0_pad), lambda i: (i, 0)),           # self feats tile
            pl.BlockSpec((d_in_pad, d_out_pad), lambda i: (0, 0)),  # W_nei^T (shared)
            pl.BlockSpec((d0_pad, d_out_pad), lambda i: (0, 0)),    # W_self^T (shared)
        ],
        out_specs=pl.BlockSpec((tm, d_out_pad), lambda i: (i, 0)),
        compiler_params=pltpu.CompilerParams(
            dimension_semantics=("parallel",),
            vmem_limit_bytes=vmem_limit),
    )(mask_p, inv_deg, src_p, self_p, wnei_t, wself_t)

    return out


# ----------------------------- host-side glue ------------------------------

def sample_neighbors(to_neighs, num_sample, rng):
    # TODO(synk): the reference aggregator uses an unseeded random.sample over Python
    # sets; a seeded rng is used here so the run is deterministic/reproducible.
    samp_neighs = []
    for nbrs in to_neighs:
        nbrs = sorted(nbrs)
        if num_sample is not None and len(nbrs) > num_sample:
            nbrs = rng.sample(nbrs, num_sample)
        samp_neighs.append(set(nbrs))
    unique_nodes_list = sorted(set.union(*samp_neighs)) if samp_neighs else []
    return unique_nodes_list, samp_neighs


def sample_all_hops(nodes, adj_lists, n_nei, num_sample, seed=0):
    """Mirrors the hop-sampling loop in Encoder._MeanMaxAggForward."""
    rng = random.Random(seed)
    sampled_nodes = [list(nodes)]
    sampled_neighs = []
    for _ in range(n_nei):
        uniq, samp = sample_neighbors(
            [adj_lists[int(n)] for n in sampled_nodes[0]], num_sample, rng)
        sampled_nodes.insert(0, uniq)
        sampled_neighs.insert(0, samp)
    return sampled_nodes, sampled_neighs


def _build_mask(samp_neighs, node_neis):
    col = {n: i for i, n in enumerate(node_neis)}
    mask = np.zeros((len(samp_neighs), len(node_neis)), np.int8)
    for r, nbrs in enumerate(samp_neighs):
        mask[r, [col[nb] for nb in nbrs]] = 1
    return mask


def encoder_forward(sampled_nodes, sampled_neighs, features_dev, nei_weights_t,
                    self_weights_t, final_out_dim):
    """Pallas path mirroring Encoder._MeanMaxAggForward (MeanAggregator, concat=False)."""
    embed_feats = features_dev
    n_valid_rows = features_dev.shape[0]

    for hop, (tgt_nodes, node_neis, samp_neighs, wnei_t, wself_t) in enumerate(zip(
            sampled_nodes[1:], sampled_nodes[:-1], sampled_neighs,
            nei_weights_t, self_weights_t)):
        # source embedding matrix: on-device gather from raw features for the first
        # hop, the (still padded) previous-hop output afterwards
        if hop == 0:
            src_feats = jnp.take(features_dev,
                                 jnp.asarray(node_neis, jnp.int32), axis=0)
        else:
            src_feats = embed_feats    # rows ordered by node_neis; extra rows masked

        # tiny host 0/1 membership mask, O(n_tgt * num_sample) writes
        mask = _build_mask(samp_neighs, node_neis)

        # 'self' branch always uses raw input features, exactly as in the reference
        self_feats = jnp.take(features_dev,
                              jnp.asarray(tgt_nodes, jnp.int32), axis=0)

        embed_feats = fused_sage_layer(mask, src_feats, self_feats, wnei_t, wself_t)
        n_valid_rows = len(tgt_nodes)

    return embed_feats[:n_valid_rows, :final_out_dim].astype(jnp.float32)


def encoder_forward_ref(sampled_nodes, sampled_neighs, feats, nei_w, self_w):
    """Pure numpy f32 reference of the same forward pass (for correctness check)."""
    n_total = feats.shape[0]
    embed = feats
    for tgt, neis, samp, wn, ws in zip(sampled_nodes[1:], sampled_nodes[:-1],
                                       sampled_neighs, nei_w, self_w):
        src = feats[np.asarray(neis, np.int64)] if embed.shape[0] == n_total else embed
        mask = _build_mask(samp, neis).astype(np.float32)
        deg = np.maximum(mask.sum(axis=1, keepdims=True), 1.0)
        neigh = (mask @ src) / deg
        selff = feats[np.asarray(tgt, np.int64)]
        embed = np.maximum(neigh @ wn.T + selff @ ws.T, 0.0)
    return embed


def xavier_uniform(key, out_dim, in_dim):
    bound = float(np.sqrt(6.0 / (in_dim + out_dim)))
    return jax.random.uniform(key, (out_dim, in_dim), jnp.float32, -bound, bound)


def prep_weight(w):
    """(d_out, d_in) f32 -> pre-transposed, bf16, lane-padded (d_in_pad, d_out_pad)."""
    d_out, d_in = w.shape
    wt = jnp.transpose(w).astype(jnp.bfloat16)
    return jnp.pad(wt, ((0, _round_up(d_in, _LANE) - d_in),
                        (0, _round_up(d_out, _LANE) - d_out)))


# --------------------------------- main ------------------------------------

if __name__ == "__main__":
    key = jax.random.PRNGKey(0)
    n_nodes, feat_dim = 40, 16
    embed_dim = [feat_dim, 32, 8]   # self.embed_dim in the module
    n_nei = 2                       # number of hops / layers
    num_sample = 4

    k_feat, k1n, k1s, k2n, k2s = jax.random.split(key, 5)
    features = jax.random.normal(k_feat, (n_nodes, feat_dim), jnp.float32)

    # deterministic small graph
    adj_lists = {
        i: {(i + 1) % n_nodes, (i + 2) % n_nodes, (i + 5) % n_nodes,
            (i - 1) % n_nodes, (i - 3) % n_nodes}
        for i in range(n_nodes)
    }

    # nei_weights[l]  : (embed_dim[l+1], embed_dim[l])
    # self_weights[l] : (embed_dim[l+1], embed_dim[0])
    nei_weights = [xavier_uniform(k1n, embed_dim[1], embed_dim[0]),
                   xavier_uniform(k2n, embed_dim[2], embed_dim[1])]
    self_weights = [xavier_uniform(k1s, embed_dim[1], embed_dim[0]),
                    xavier_uniform(k2s, embed_dim[2], embed_dim[0])]

    # pre-transpose + lane-pad weights once (host-side, free) -> (d_in_pad, d_out_pad) bf16
    nei_weights_t = [prep_weight(w) for w in nei_weights]
    self_weights_t = [prep_weight(w) for w in self_weights]

    # features on device once: bf16, lane-padded to 128
    feats_dev = jnp.pad(features.astype(jnp.bfloat16),
                        ((0, 0), (0, _round_up(feat_dim, _LANE) - feat_dim)))

    nodes = list(range(8))  # batch of node ids to encode
    sampled_nodes, sampled_neighs = sample_all_hops(nodes, adj_lists, n_nei,
                                                    num_sample, seed=0)

    out = encoder_forward(sampled_nodes, sampled_neighs, feats_dev,
                          nei_weights_t, self_weights_t, embed_dim[-1])
    jax.block_until_ready(out)

    # correctness check against a pure f32 numpy reference (bf16 tolerance)
    ref = encoder_forward_ref(sampled_nodes, sampled_neighs,
                              np.asarray(features, np.float32),
                              [np.asarray(w, np.float32) for w in nei_weights],
                              [np.asarray(w, np.float32) for w in self_weights])
    assert out.shape == (len(nodes), embed_dim[-1]), out.shape
    assert bool(jnp.all(out >= 0.0))  # relu output
    np.testing.assert_allclose(np.asarray(out), ref, rtol=5e-2, atol=5e-2)
    print("KERNEL_OK")
</pallas_src>

<mosaic_0001>
module attributes {stable_mosaic.version = 11 : i64} {
  func.func @_fused_sage_kernel(%arg0: i32, %arg1: memref<16x128xbf16, #tpu.memory_space<vmem>>, %arg2: memref<16x1xf32, #tpu.memory_space<vmem>>, %arg3: memref<128x128xbf16, #tpu.memory_space<vmem>>, %arg4: memref<16x128xbf16, #tpu.memory_space<vmem>>, %arg5: memref<128x128xbf16, #tpu.memory_space<vmem>>, %arg6: memref<128x128xbf16, #tpu.memory_space<vmem>>, %arg7: memref<16x128xbf16, #tpu.memory_space<vmem>>) attributes {dimension_semantics = [#tpu.dimension_semantics<parallel>], iteration_bounds = array<i64: 1>, scalar_prefetch = 0 : i64, scratch_operands = 0 : i64, tpu.core_type = #tpu.core_type<tc>, window_params = [{transform_indices = @transform_0, window_bounds = array<i64: 16, 128>}, {transform_indices = @transform_1, window_bounds = array<i64: 16, 1>}, {pipeline_mode = #tpu.pipeline_mode<synchronous>, transform_indices = @transform_2, window_bounds = array<i64: 128, 128>}, {transform_indices = @transform_3, window_bounds = array<i64: 16, 128>}, {pipeline_mode = #tpu.pipeline_mode<synchronous>, transform_indices = @transform_4, window_bounds = array<i64: 128, 128>}, {pipeline_mode = #tpu.pipeline_mode<synchronous>, transform_indices = @transform_5, window_bounds = array<i64: 128, 128>}, {transform_indices = @transform_6, window_bounds = array<i64: 16, 128>}]} {
    %c0 = arith.constant 0 : index
    %c0_0 = arith.constant 0 : index
    %0 = vector.load %arg1[%c0, %c0_0] : memref<16x128xbf16, #tpu.memory_space<vmem>>, vector<16x128xbf16>
    %c0_1 = arith.constant 0 : index
    %c0_2 = arith.constant 0 : index
    %1 = vector.load %arg3[%c0_1, %c0_2] : memref<128x128xbf16, #tpu.memory_space<vmem>>, vector<128x128xbf16>
    %cst = arith.constant dense<0.000000e+00> : vector<16x128xf32>
    %2 = tpu.matmul %0, %1, %cst {dimension_numbers = #tpu.dot_dimension_numbers<[1], [0], [0], [1], [0, 0, 1, 1], [], []>} : vector<16x128xbf16>, vector<128x128xbf16>, vector<16x128xf32> -> vector<16x128xf32>
    %c0_3 = arith.constant 0 : index
    %c0_4 = arith.constant 0 : index
    %3 = vector.load %arg2[%c0_3, %c0_4] : memref<16x1xf32, #tpu.memory_space<vmem>>, vector<16x1xf32>
    %4 = vector.broadcast %3 : vector<16x1xf32> to vector<16x128xf32>
    %5 = arith.mulf %2, %4 : vector<16x128xf32>
    %6 = arith.truncf %5 : vector<16x128xf32> to vector<16x128xbf16>
    %c0_5 = arith.constant 0 : index
    %c0_6 = arith.constant 0 : index
    %7 = vector.load %arg5[%c0_5, %c0_6] : memref<128x128xbf16, #tpu.memory_space<vmem>>, vector<128x128xbf16>
    %cst_7 = arith.constant dense<0.000000e+00> : vector<16x128xf32>
    %8 = tpu.matmul %6, %7, %cst_7 {dimension_numbers = #tpu.dot_dimension_numbers<[1], [0], [0], [1], [0, 0, 1, 1], [], []>} : vector<16x128xbf16>, vector<128x128xbf16>, vector<16x128xf32> -> vector<16x128xf32>
    %c0_8 = arith.constant 0 : index
    %c0_9 = arith.constant 0 : index
    %9 = vector.load %arg4[%c0_8, %c0_9] : memref<16x128xbf16, #tpu.memory_space<vmem>>, vector<16x128xbf16>
    %c0_10 = arith.constant 0 : index
    %c0_11 = arith.constant 0 : index
    %10 = vector.load %arg6[%c0_10, %c0_11] : memref<128x128xbf16, #tpu.memory_space<vmem>>, vector<128x128xbf16>
    %cst_12 = arith.constant dense<0.000000e+00> : vector<16x128xf32>
    %11 = tpu.matmul %9, %10, %cst_12 {dimension_numbers = #tpu.dot_dimension_numbers<[1], [0], [0], [1], [0, 0, 1, 1], [], []>} : vector<16x128xbf16>, vector<128x128xbf16>, vector<16x128xf32> -> vector<16x128xf32>
    %12 = arith.addf %8, %11 : vector<16x128xf32>
    %cst_13 = arith.constant 0.000000e+00 : f32
    %13 = vector.broadcast %cst_13 : f32 to vector<16x128xf32>
    %14 = arith.maximumf %12, %13 : vector<16x128xf32>
    %15 = arith.truncf %14 : vector<16x128xf32> to vector<16x128xbf16>
    %c0_14 = arith.constant 0 : index
    %c0_15 = arith.constant 0 : index
    %16 = vector.load %arg7[%c0_14, %c0_15] : memref<16x128xbf16, #tpu.memory_space<vmem>>, vector<16x128xbf16>
    tpu.vector_store %arg7[%c0_14, %c0_15], %15 {strides = array<i32>} : memref<16x128xbf16, #tpu.memory_space<vmem>>, vector<16x128xbf16>,
    return
  }
  func.func @transform_0(%arg0: i32) -> (i32, i32) {
    %c0_i32 = arith.constant 0 : i32
    %c0_i32_0 = arith.constant 0 : i32
    return %arg0, %c0_i32 : i32, i32
  }
  func.func @transform_1(%arg0: i32) -> (i32, i32) {
    %c0_i32 = arith.constant 0 : i32
    %c0_i32_0 = arith.constant 0 : i32
    return %arg0, %c0_i32 : i32, i32
  }
  func.func @transform_2(%arg0: i32) -> (i32, i32) {
    %c0_i32 = arith.constant 0 : i32
    %c0_i32_0 = arith.constant 0 : i32
    %c0_i32_1 = arith.constant 0 : i32
    return %c0_i32, %c0_i32_0 : i32, i32
  }
  func.func @transform_3(%arg0: i32) -> (i32, i32) {
    %c0_i32 = arith.constant 0 : i32
    %c0_i32_0 = arith.constant 0 : i32
    return %arg0, %c0_i32 : i32, i32
  }
  func.func @transform_4(%arg0: i32) -> (i32, i32) {
    %c0_i32 = arith.constant 0 : i32
    %c0_i32_0 = arith.constant 0 : i32
    %c0_i32_1 = arith.constant 0 : i32
    return %c0_i32, %c0_i32_0 : i32, i32
  }
  func.func @transform_5(%arg0: i32) -> (i32, i32) {
    %c0_i32 = arith.constant 0 : i32
    %c0_i32_0 = arith.constant 0 : i32
    %c0_i32_1 = arith.constant 0 : i32
    return %c0_i32, %c0_i32_0 : i32, i32
  }
  func.func @transform_6(%arg0: i32) -> (i32, i32) {
    %c0_i32 = arith.constant 0 : i32
    %c0_i32_0 = arith.constant 0 : i32
    return %arg0, %c0_i32 : i32, i32
  }
}

</mosaic_0001>

<llo_original>
// kernel: tpu_custom_call.1
$region0: #{tpu_custom_call.1}
  #allocation0 [shape = 'u32[]', space=smem, size = 0x4, offset = 0x4, fixed_abs, tag = 'smem constant byte address 0x4 - core index']
  #allocation1 [shape = 'u32[144,128]{1,0:T(1,128)}', space=vmem, size = 0x12000, scoped, tag = 'internal scratch']
  %s0 = inlined_call_operand.vmem [shape: bf16[16,128], index: 0, kind: input, shape index: {}]
  %s1 = inlined_call_operand.vmem [shape: f32[16,1], index: 1, kind: input, shape index: {}]
  %s2 = inlined_call_operand.hbm [shape: bf16[128,128], index: 2, kind: input, shape index: {}]
  %s3 = inlined_call_operand.vmem [shape: bf16[16,128], index: 3, kind: input, shape index: {}]
  %s4 = inlined_call_operand.hbm [shape: bf16[128,128], index: 4, kind: input, shape index: {}]
  %s5 = inlined_call_operand.hbm [shape: bf16[128,128], index: 5, kind: input, shape index: {}]
  %s6 = inlined_call_operand.hbm [shape: bf16[16,128], index: 6, kind: output, shape index: {}]
  %s7 = sld [smem:[#allocation0]]
  $region46: #{tpu_custom_call.1} parent=0
    _
  %s9 = ssub.s32 1, %s7
  %s10 = scalar_select 0, %s9, %s7
  $region1: #{tpu_custom_call.1} parent=0
    #allocation2 [shape = 'u8[32768]{0}', space=vmem, size = 0x8000, scoped, tag = 'input window, operand 2, single buffered']
    #allocation3 [shape = 's32[1]{0}', space=sflag, size = 0x4, scoped, tag = 'scoped memory for tpu_custom_call.1']
    #allocation4 [shape = 's32[1]{0}', space=sflag, size = 0x4, scoped, tag = 'scoped memory for tpu_custom_call.1']
    #allocation5 [shape = 'u8[32768]{0}', space=vmem, size = 0x8000, scoped, tag = 'input window, operand 4, single buffered']
    #allocation6 [shape = 's32[1]{0}', space=sflag, size = 0x4, scoped, tag = 'scoped memory for tpu_custom_call.1']
    #allocation7 [shape = 'u8[32768]{0}', space=vmem, size = 0x8000, scoped, tag = 'input window, operand 5, single buffered']
    #allocation8 [shape = 'u8[4096]{0}', space=vmem, size = 0x1000, scoped, tag = 'output window, operand 0, single buffered']
    %11 = vsyncpa [#allocation3], 0
    %12 = vsyncpa [#allocation6], 0
    %13 = vsyncpa [#allocation4], 0
    // Predicated region
    $region2: #{tpu_custom_call.1} parent=1 // pred_check
      _
    $region3: #{tpu_custom_call.1} parent=1 // pred_check_branch
      %15 = sbr.rel (0) target = $region5
    $region4: #{tpu_custom_call.1} parent=1 // pred_region
      _
    $region5: #{tpu_custom_call.1} parent=1 // pred_fallthru
      _
    // Predicated region
    $region6: #{tpu_custom_call.1} parent=1 // pred_check
      _
    $region7: #{tpu_custom_call.1} parent=1 // pred_check_branch
      %17 = sbr.rel (0) target = $region9
    $region8: #{tpu_custom_call.1} parent=1 // pred_region
      _
    $region9: #{tpu_custom_call.1} parent=1 // pred_fallthru
      _
    // Predicated region
    $region10: #{tpu_custom_call.1} parent=1 // pred_check
      _
    $region11: #{tpu_custom_call.1} parent=1 // pred_check_branch
      %19 = sbr.rel (0) target = $region13
    $region12: #{tpu_custom_call.1} parent=1 // pred_region
      %s21 = ssub.s32 1024, 1024
      %22 = vsyncadd [#allocation3], %s21
      %s23 = sshll.u32 [#allocation2], 4
      %s24 = int_to_ptr.vmem [resolvable:$true] %s23
      %29 = dma.hbm_to_vmem [thread:$0]  %s2, 1024, %s24, [#allocation3], 64, 64, 4
    $region13: #{tpu_custom_call.1} parent=1 // pred_fallthru
      _
    // Predicated region
    $region14: #{tpu_custom_call.1} parent=1 // pred_check
      _
    $region15: #{tpu_custom_call.1} parent=1 // pred_check_branch
      %31 = sbr.rel (0) target = $region17
    $region16: #{tpu_custom_call.1} parent=1 // pred_region
      _
    $region17: #{tpu_custom_call.1} parent=1 // pred_fallthru
      _
    // Predicated region
    $region18: #{tpu_custom_call.1} parent=1 // pred_check
      _
    $region19: #{tpu_custom_call.1} parent=1 // pred_check_branch
      %33 = sbr.rel (0) target = $region21
    $region20: #{tpu_custom_call.1} parent=1 // pred_region
      %s35 = ssub.s32 1024, 1024
      %36 = vsyncadd [#allocation6], %s35
      %s37 = sshll.u32 [#allocation5], 4
      %s38 = int_to_ptr.vmem [resolvable:$true] %s37
      %43 = dma.hbm_to_vmem [thread:$0]  %s4, 1024, %s38, [#allocation6], 64, 64, 4
    $region21: #{tpu_custom_call.1} parent=1 // pred_fallthru
      _
    // Predicated region
    $region22: #{tpu_custom_call.1} parent=1 // pred_check
      _
    $region23: #{tpu_custom_call.1} parent=1 // pred_check_branch
      %45 = sbr.rel (0) target = $region25
    $region24: #{tpu_custom_call.1} parent=1 // pred_region
      %s47 = ssub.s32 1024, 1024
      %48 = vsyncadd [#allocation6], %s47
      %s49 = sshll.u32 [#allocation7], 4
      %s50 = int_to_ptr.vmem [resolvable:$true] %s49
      %55 = dma.hbm_to_vmem [thread:$0]  %s5, 1024, %s50, [#allocation6], 64, 64, 4
    $region25: #{tpu_custom_call.1} parent=1 // pred_fallthru
      _
    // Predicated region
    $region26: #{tpu_custom_call.1} parent=1 // pred_check
      _
    $region27: #{tpu_custom_call.1} parent=1 // pred_check_branch
      %57 = sbr.rel (0) target = $region29
    $region28: #{tpu_custom_call.1} parent=1 // pred_region
      %58 = dma.done [#allocation3], 1024
    $region29: #{tpu_custom_call.1} parent=1 // pred_fallthru
      _
    // Predicated region
    $region30: #{tpu_custom_call.1} parent=1 // pred_check
      _
    $region31: #{tpu_custom_call.1} parent=1 // pred_check_branch
      %60 = sbr.rel (0) target = $region33
    $region32: #{tpu_custom_call.1} parent=1 // pred_region
      %61 = dma.done [#allocation6], 1024
    $region33: #{tpu_custom_call.1} parent=1 // pred_fallthru
      _
    // Predicated region
    $region34: #{tpu_custom_call.1} parent=1 // pred_check
      _
    $region35: #{tpu_custom_call.1} parent=1 // pred_check_branch
      %63 = sbr.rel (0) target = $region37
    $region36: #{tpu_custom_call.1} parent=1 // pred_region
      %64 = dma.done [#allocation6], 1024
    $region37: #{tpu_custom_call.1} parent=1 // pred_fallthru
      _
    %v66 = vld [vmem:[%s0] sm:$0xf]
    %v67 = vld [vmem:[%s0 + $0x4] sm:$0xf]
    %v68 = vld [vmem:[#allocation2] sm:$0xf]
    %v69 = vld [vmem:[#allocation2 + $0x4] sm:$0xf]
    %v70 = vld [vmem:[#allocation2 + $0x8] sm:$0xf]
    %v71 = vld [vmem:[#allocation2 + $0xc] sm:$0xf]
    %v72 = vld [vmem:[#allocation2 + $0x10] sm:$0xf]
    %v73 = vld [vmem:[#allocation2 + $0x14] sm:$0xf]
    %v74 = vld [vmem:[#allocation2 + $0x18] sm:$0xf]
    %v75 = vld [vmem:[#allocation2 + $0x1c] sm:$0xf]
    %v76 = vld [vmem:[#allocation2 + $0x20] sm:$0xf]
    %v77 = vld [vmem:[#allocation2 + $0x24] sm:$0xf]
    %v78 = vld [vmem:[#allocation2 + $0x28] sm:$0xf]
    %v79 = vld [vmem:[#allocation2 + $0x2c] sm:$0xf]
    %v80 = vld [vmem:[#allocation2 + $0x30] sm:$0xf]
    %v81 = vld [vmem:[#allocation2 + $0x34] sm:$0xf]
    %v82 = vld [vmem:[#allocation2 + $0x38] sm:$0xf]
    %v83 = vld [vmem:[#allocation2 + $0x3c] sm:$0xf]
    %v86 = vunpack.c.l.b16 %v66
    %v87 = vunpack.c.l.b16 %v67
    %v88 = vpack.c.b16 %v87, %v86
    %v106 = vunpack.c.l.b16 %v68
    %v107 = vunpack.c.l.b16 %v69
    %v108 = vunpack.c.l.b16 %v70
    %v109 = vunpack.c.l.b16 %v71
    %v110 = vunpack.c.l.b16 %v72
    %v111 = vunpack.c.l.b16 %v73
    %v112 = vunpack.c.l.b16 %v74
    %v113 = vunpack.c.l.b16 %v75
    %v114 = vunpack.c.l.b16 %v76
    %v115 = vunpack.c.l.b16 %v77
    %v116 = vunpack.c.l.b16 %v78
    %v117 = vunpack.c.l.b16 %v79
    %v118 = vunpack.c.l.b16 %v80
    %v119 = vunpack.c.l.b16 %v81
    %v120 = vunpack.c.l.b16 %v82
    %v121 = vunpack.c.l.b16 %v83
    %v122 = vpack.c.b16 %v107, %v106
    %v123 = vpack.c.b16 %v109, %v108
    %v124 = vpack.c.b16 %v111, %v110
    %v125 = vpack.c.b16 %v113, %v112
    %v126 = vpack.c.b16 %v115, %v114
    %v127 = vpack.c.b16 %v117, %v116
    %v128 = vpack.c.b16 %v119, %v118
    %v129 = vpack.c.b16 %v121, %v120
    %138 = vmatprep.subr.bf16.mxu0 0
    %139 = vmatpush1.bf16.msra.mxu0 %v122
    %140 = vmatprep.subr.bf16.mxu0 0
    %141 = vmatpush1.bf16.msra.mxu0 %v123
    %142 = vmatprep.subr.bf16.mxu0 0
    %143 = vmatpush1.bf16.msra.mxu0 %v124
    %144 = vmatprep.subr.bf16.mxu0 0
    %145 = vmatpush1.bf16.msra.mxu0 %v125
    %146 = vmatprep.subr.bf16.mxu0 0
    %147 = vmatpush1.bf16.msra.mxu0 %v126
    %148 = vmatprep.subr.bf16.mxu0 0
    %149 = vmatpush1.bf16.msra.mxu0 %v127
    %150 = vmatprep.subr.bf16.mxu0 0
    %151 = vmatpush1.bf16.msra.mxu0 %v128
    %152 = vmatprep.subr.bf16.mxu0 0
    %153 = vmatpush1.bf16.msra.mxu0 %v129
    %154 = vmatprep.subr.bf16.mxu0 0
    %155 = vmatpush1.bf16.msra.mxu0 0
    %156 = vmatprep.subr.bf16.mxu0 0
    %157 = vmatpush1.bf16.msra.mxu0 0
    %158 = vmatprep.subr.bf16.mxu0 0
    %159 = vmatpush1.bf16.msra.mxu0 0
    %160 = vmatprep.subr.bf16.mxu0 0
    %161 = vmatpush1.bf16.msra.mxu0 0
    %162 = vmatprep.subr.bf16.mxu0 0
    %163 = vmatpush1.bf16.msra.mxu0 0
    %164 = vmatprep.subr.bf16.mxu0 0
    %165 = vmatpush1.bf16.msra.mxu0 0
    %166 = vmatprep.subr.bf16.mxu0 0
    %167 = vmatpush1.bf16.msra.mxu0 0
    %168 = vmatprep.subr.bf16.mxu0 0
    %169 = vmatpush1.bf16.msra.mxu0 0
    %170 = vmatprep.mubr.bf16.mxu0 0
    %171 = vmatmul.mubr.bf16.gmra.mrb[0].mxu0 %v88
    %v172 = vpop.f32.mrb[0].mxu0
    %v173 = vadd.f32 0.0, %v172
    %v174 = vpop.f32.mrb[0].mxu0
    %v175 = vpop.f32.mrb[0].mxu0
    %v176 = vadd.f32 0.0, %v175
    %v177 = vpop.f32.mrb[0].mxu0
    %178 = vdwg.mxu0
    %v179 = vld [vmem:[%s1] sm:$0xff]
    %v180 = vld [vmem:[%s1 + $0x8] sm:$0xff]
    %182 = vset.pattern.permute.xlu0 0
    %183 = vperm.xlu0 %182, %v179
    %v184 = vpop.permute.xlu0 %183
    %187 = vset.pattern.permute.xlu0 0
    %188 = vperm.xlu0 %187, %v180
    %v189 = vpop.permute.xlu0 %188
    %v191 = vmul.f32 %v173, %v184
    %v192 = vmul.f32 %v176, %v189
    %v193 = vpack.c.bf16 %v192, %v191
    %v194 = vld [vmem:[#allocation5] sm:$0xf]
    %v195 = vld [vmem:[#allocation5 + $0x4] sm:$0xf]
    %v196 = vld [vmem:[#allocation5 + $0x8] sm:$0xf]
    %v197 = vld [vmem:[#allocation5 + $0xc] sm:$0xf]
    %v198 = vld [vmem:[#allocation5 + $0x10] sm:$0xf]
    %v199 = vld [vmem:[#allocation5 + $0x14] sm:$0xf]
    %v200 = vld [vmem:[#allocation5 + $0x18] sm:$0xf]
    %v201 = vld [vmem:[#allocation5 + $0x1c] sm:$0xf]
    %v202 = vld [vmem:[#allocation5 + $0x20] sm:$0xf]
    %v203 = vld [vmem:[#allocation5 + $0x24] sm:$0xf]
    %v204 = vld [vmem:[#allocation5 + $0x28] sm:$0xf]
    %v205 = vld [vmem:[#allocation5 + $0x2c] sm:$0xf]
    %v206 = vld [vmem:[#allocation5 + $0x30] sm:$0xf]
    %v207 = vld [vmem:[#allocation5 + $0x34] sm:$0xf]
    %v208 = vld [vmem:[#allocation5 + $0x38] sm:$0xf]
    %v209 = vld [vmem:[#allocation5 + $0x3c] sm:$0xf]
    %v210 = vld [vmem:[%s3] sm:$0xf]
    %v211 = vld [vmem:[%s3 + $0x4] sm:$0xf]
    %v212 = vld [vmem:[#allocation7] sm:$0xf]
    %v213 = vld [vmem:[#allocation7 + $0x4] sm:$0xf]
    %v214 = vld [vmem:[#allocation7 + $0x8] sm:$0xf]
    %v215 = vld [vmem:[#allocation7 + $0xc] sm:$0xf]
    %v216 = vld [vmem:[#allocation7 + $0x10] sm:$0xf]
    %v217 = vld [vmem:[#allocation7 + $0x14] sm:$0xf]
    %v218 = vld [vmem:[#allocation7 + $0x18] sm:$0xf]
    %v219 = vld [vmem:[#allocation7 + $0x1c] sm:$0xf]
    %v220 = vld [vmem:[#allocation7 + $0x20] sm:$0xf]
    %v221 = vld [vmem:[#allocation7 + $0x24] sm:$0xf]
    %v222 = vld [vmem:[#allocation7 + $0x28] sm:$0xf]
    %v223 = vld [vmem:[#allocation7 + $0x2c] sm:$0xf]
    %v224 = vld [vmem:[#allocation7 + $0x30] sm:$0xf]
    %v225 = vld [vmem:[#allocation7 + $0x34] sm:$0xf]
    %v226 = vld [vmem:[#allocation7 + $0x38] sm:$0xf]
    %v227 = vld [vmem:[#allocation7 + $0x3c] sm:$0xf]
    %v230 = vunpack.c.l.b16 %v210
    %v231 = vunpack.c.l.b16 %v211
    %v232 = vpack.c.b16 %v231, %v230
    %v250 = vunpack.c.l.b16 %v212
    %v251 = vunpack.c.l.b16 %v213
    %v252 = vunpack.c.l.b16 %v214
    %v253 = vunpack.c.l.b16 %v215
    %v254 = vunpack.c.l.b16 %v216
    %v255 = vunpack.c.l.b16 %v217
    %v256 = vunpack.c.l.b16 %v218
    %v257 = vunpack.c.l.b16 %v219
    %v258 = vunpack.c.l.b16 %v220
    %v259 = vunpack.c.l.b16 %v221
    %v260 = vunpack.c.l.b16 %v222
    %v261 = vunpack.c.l.b16 %v223
    %v262 = vunpack.c.l.b16 %v224
    %v263 = vunpack.c.l.b16 %v225
    %v264 = vunpack.c.l.b16 %v226
    %v265 = vunpack.c.l.b16 %v227
    %v266 = vpack.c.b16 %v251, %v250
    %v267 = vpack.c.b16 %v253, %v252
    %v268 = vpack.c.b16 %v255, %v254
    %v269 = vpack.c.b16 %v257, %v256
    %v270 = vpack.c.b16 %v259, %v258
    %v271 = vpack.c.b16 %v261, %v260
    %v272 = vpack.c.b16 %v263, %v262
    %v273 = vpack.c.b16 %v265, %v264
    %282 = vmatprep.subr.bf16.mxu0 0
    %283 = vmatpush1.bf16.msra.mxu0 %v266
    %284 = vmatprep.subr.bf16.mxu0 0
    %285 = vmatpush1.bf16.msra.mxu0 %v267
    %286 = vmatprep.subr.bf16.mxu0 0
    %287 = vmatpush1.bf16.msra.mxu0 %v268
    %288 = vmatprep.subr.bf16.mxu0 0
    %289 = vmatpush1.bf16.msra.mxu0 %v269
    %290 = vmatprep.subr.bf16.mxu0 0
    %291 = vmatpush1.bf16.msra.mxu0 %v270
    %292 = vmatprep.subr.bf16.mxu0 0
    %293 = vmatpush1.bf16.msra.mxu0 %v271
    %294 = vmatprep.subr.bf16.mxu0 0
    %295 = vmatpush1.bf16.msra.mxu0 %v272
    %296 = vmatprep.subr.bf16.mxu0 0
    %297 = vmatpush1.bf16.msra.mxu0 %v273
    %298 = vmatprep.subr.bf16.mxu0 0
    %299 = vmatpush1.bf16.msra.mxu0 0
    %300 = vmatprep.subr.bf16.mxu0 0
    %301 = vmatpush1.bf16.msra.mxu0 0
    %302 = vmatprep.subr.bf16.mxu0 0
    %303 = vmatpush1.bf16.msra.mxu0 0
    %304 = vmatprep.subr.bf16.mxu0 0
    %305 = vmatpush1.bf16.msra.mxu0 0
    %306 = vmatprep.subr.bf16.mxu0 0
    %307 = vmatpush1.bf16.msra.mxu0 0
    %308 = vmatprep.subr.bf16.mxu0 0
    %309 = vmatpush1.bf16.msra.mxu0 0
    %310 = vmatprep.subr.bf16.mxu0 0
    %311 = vmatpush1.bf16.msra.mxu0 0
    %312 = vmatprep.subr.bf16.mxu0 0
    %313 = vmatpush1.bf16.msra.mxu0 0
    %314 = vmatprep.mubr.bf16.mxu0 0
    %315 = vmatmul.mubr.bf16.gmra.mrb[0].mxu0 %v232
    %v316 = vpop.f32.mrb[0].mxu0
    %v317 = vadd.f32 0.0, %v316
    %v318 = vpop.f32.mrb[0].mxu0
    %v319 = vpop.f32.mrb[0].mxu0
    %v320 = vadd.f32 0.0, %v319
    %v321 = vpop.f32.mrb[0].mxu0
    %322 = vdwg.mxu0
    %v339 = vunpack.c.l.b16 %v194
    %v340 = vunpack.c.l.b16 %v195
    %v341 = vunpack.c.l.b16 %v196
    %v342 = vunpack.c.l.b16 %v197
    %v343 = vunpack.c.l.b16 %v198
    %v344 = vunpack.c.l.b16 %v199
    %v345 = vunpack.c.l.b16 %v200
    %v346 = vunpack.c.l.b16 %v201
    %v347 = vunpack.c.l.b16 %v202
    %v348 = vunpack.c.l.b16 %v203
    %v349 = vunpack.c.l.b16 %v204
    %v350 = vunpack.c.l.b16 %v205
    %v351 = vunpack.c.l.b16 %v206
    %v352 = vunpack.c.l.b16 %v207
    %v353 = vunpack.c.l.b16 %v208
    %v354 = vunpack.c.l.b16 %v209
    %v355 = vpack.c.b16 %v340, %v339
    %v356 = vpack.c.b16 %v342, %v341
    %v357 = vpack.c.b16 %v344, %v343
    %v358 = vpack.c.b16 %v346, %v345
    %v359 = vpack.c.b16 %v348, %v347
    %v360 = vpack.c.b16 %v350, %v349
    %v361 = vpack.c.b16 %v352, %v351
    %v362 = vpack.c.b16 %v354, %v353
    %371 = vmatprep.subr.bf16.mxu0 0
    %372 = vmatpush1.bf16.msra.mxu0 %v355
    %373 = vmatprep.subr.bf16.mxu0 0
    %374 = vmatpush1.bf16.msra.mxu0 %v356
    %375 = vmatprep.subr.bf16.mxu0 0
    %376 = vmatpush1.bf16.msra.mxu0 %v357
    %377 = vmatprep.subr.bf16.mxu0 0
    %378 = vmatpush1.bf16.msra.mxu0 %v358
    %379 = vmatprep.subr.bf16.mxu0 0
    %380 = vmatpush1.bf16.msra.mxu0 %v359
    %381 = vmatprep.subr.bf16.mxu0 0
    %382 = vmatpush1.bf16.msra.mxu0 %v360
    %383 = vmatprep.subr.bf16.mxu0 0
    %384 = vmatpush1.bf16.msra.mxu0 %v361
    %385 = vmatprep.subr.bf16.mxu0 0
    %386 = vmatpush1.bf16.msra.mxu0 %v362
    %387 = vmatprep.subr.bf16.mxu0 0
    %388 = vmatpush1.bf16.msra.mxu0 0
    %389 = vmatprep.subr.bf16.mxu0 0
    %390 = vmatpush1.bf16.msra.mxu0 0
    %391 = vmatprep.subr.bf16.mxu0 0
    %392 = vmatpush1.bf16.msra.mxu0 0
    %393 = vmatprep.subr.bf16.mxu0 0
    %394 = vmatpush1.bf16.msra.mxu0 0
    %395 = vmatprep.subr.bf16.mxu0 0
    %396 = vmatpush1.bf16.msra.mxu0 0
    %397 = vmatprep.subr.bf16.mxu0 0
    %398 = vmatpush1.bf16.msra.mxu0 0
    %399 = vmatprep.subr.bf16.mxu0 0
    %400 = vmatpush1.bf16.msra.mxu0 0
    %401 = vmatprep.subr.bf16.mxu0 0
    %402 = vmatpush1.bf16.msra.mxu0 0
    %403 = vmatprep.mubr.bf16.mxu0 0
    %404 = vmatmul.mubr.bf16.gmra.mrb[0].mxu0 %v193
    %v405 = vpop.f32.mrb[0].mxu0
    %v406 = vadd.f32 %v317, %v405
    %v407 = vpop.f32.mrb[0].mxu0
    %v408 = vpop.f32.mrb[0].mxu0
    %v409 = vadd.f32 %v320, %v408
    %v410 = vpop.f32.mrb[0].mxu0
    %411 = vdwg.mxu0
    %v412 = vmax.f32 %v406, 0.0
    %v413 = vmax.f32 %v409, 0.0
    %v414 = vpack.c.bf16 %v413, %v412
    %v416 = vunpack.c.l.b16 %v414
    %v417 = vunpack.c.h.b16 %v414
    %v418 = vpack.c.b16 %v416, %v416
    %v419 = vpack.c.b16 %v417, %v417
    %422 = vst [vmem:[#allocation8] sm:$0xf] %v418
    %423 = vst [vmem:[#allocation8 + $0x4] sm:$0xf] %v419
    // Predicated region
    $region38: #{tpu_custom_call.1} parent=1 // pred_check
      _
    $region39: #{tpu_custom_call.1} parent=1 // pred_check_branch
      %425 = sbr.rel (0) target = $region41
    $region40: #{tpu_custom_call.1} parent=1 // pred_region
      %s427 = ssub.s32 128, 128
      %428 = vsyncadd [#allocation4], %s427
      %s429 = sshll.u32 [#allocation8], 4
      %s430 = int_to_ptr.vmem [resolvable:$true] %s429
      %435 = dma.vmem_to_hbm [thread:$0]  %s430, 128, %s6, [#allocation4], 64, 64, 4
    $region41: #{tpu_custom_call.1} parent=1 // pred_fallthru
      _
    // Predicated region
    $region42: #{tpu_custom_call.1} parent=1 // pred_check
      _
    $region43: #{tpu_custom_call.1} parent=1 // pred_check_branch
      %437 = sbr.rel (0) target = $region45
    $region44: #{tpu_custom_call.1} parent=1 // pred_region
      %438 = dma.done [#allocation4], 128
    $region45: #{tpu_custom_call.1} parent=1 // pred_fallthru
      _
    %439 = vsyncpa [#allocation3], 1
    %440 = vsyncpa [#allocation6], 1
    %441 = vsyncpa [#allocation4], 1

</llo_original>
